<compile_context>
chip_gen: v7x
topology: tpu7x:2x2x1
jax: 0.10.0
libtpu: 0.0.40
codegen_flags: <defaults>
</compile_context>

<pallas_src>
import numpy as np

import jax
import jax.numpy as jnp
from jax.experimental import pallas as pl
from jax.experimental.pallas import tpu as pltpu


# ----------------------------------------------------------------------------
# Pallas kernel: fused element-wise apply
# ----------------------------------------------------------------------------
def _impulse_noise_kernel(coef_ref, x_ref, mul_ref, add_ref, o_ref):
    c_mul = coef_ref[0]                       # scalar, SMEM
    c_add = coef_ref[1]                       # scalar, SMEM
    x = x_ref[...]
    out = (1.0 + c_mul * mul_ref[...]) * x + c_add * add_ref[...]
    o_ref[...] = out.astype(o_ref.dtype)


def _pick_block(dim, target, align):
    """Largest block <= target that is either the full dim or `align`-aligned."""
    if dim <= target:
        return dim                            # full-dim block is always legal
    return max(align, (target // align) * align)


def impulse_noise_inject_apply(x, mul_noise, add_noise, c_mul, c_add):
    """out = (1 + c_mul * mul_noise) * x + c_add * add_noise, tiled over (rows, lanes)."""
    orig_shape = x.shape
    C = orig_shape[-1]
    R = 1
    for d in orig_shape[:-1]:
        R *= int(d)

    x2 = x.reshape(R, C)
    mul2 = mul_noise.reshape(R, C).astype(jnp.float32)
    add2 = add_noise.reshape(R, C).astype(jnp.float32)
    coefs = jnp.asarray([c_mul, c_add], dtype=jnp.float32)

    block_r = _pick_block(R, 256, 8)          # sublane axis
    block_c = _pick_block(C, 1024, 128)       # lane axis (lane-dense output stores)
    grid = (pl.cdiv(R, block_r), pl.cdiv(C, block_c))

    data_spec = pl.BlockSpec((block_r, block_c), lambda i, j: (i, j))

    out2 = pl.pallas_call(
        _impulse_noise_kernel,
        out_shape=jax.ShapeDtypeStruct((R, C), x.dtype),
        grid=grid,
        in_specs=[
            pl.BlockSpec(memory_space=pltpu.MemorySpace.SMEM),   # [c_mul, c_add]
            data_spec,                                           # x tile
            data_spec,                                           # mul_noise tile
            data_spec,                                           # add_noise tile
        ],
        out_specs=data_spec,
        compiler_params=pltpu.CompilerParams(
            dimension_semantics=("parallel", "parallel")),
    )(coefs, x2, mul2, add2)

    return out2.reshape(orig_shape)


# ----------------------------------------------------------------------------
# Noise generation (host-side jax.random; independent draws as in PyTorch)
# ----------------------------------------------------------------------------
def _make_noise(key, shape, mul_impulse, add_impulse):
    k1, k2, k3, k4 = jax.random.split(key, 4)
    u = jax.random.uniform(k1, shape, dtype=jnp.float32, minval=-1.0, maxval=1.0)
    m1 = jax.random.bernoulli(k2, float(mul_impulse), shape)
    n = jax.random.normal(k3, shape, dtype=jnp.float32)
    m2 = jax.random.bernoulli(k4, float(add_impulse), shape)
    mul_noise = jnp.where(m1, u, 0.0)
    add_noise = jnp.where(m2, n, 0.0)
    return mul_noise, add_noise


# ----------------------------------------------------------------------------
# Module wrapper (JAX/Pallas port of the PyTorch nn.Module, no parameters)
# ----------------------------------------------------------------------------
class ImpulseNoiseInject:
    def __init__(self, drop_prob=(0.2, 0.4, 0.5, 0.5), linear_step=0, seed=0):
        self.drop_prob = drop_prob[0]
        self.add_prob = drop_prob[1]
        self.mul_impulse = drop_prob[2]
        self.add_impulse = drop_prob[3]
        self.linear_step = linear_step
        self.this_step = 0
        self.training = True
        self._beta_rng = np.random.default_rng(seed)   # host-side Beta(2,5) draws

    def __call__(self, x, key=None):
        if not self.training:
            return x
        c_mul = 0.0
        c_add = 0.0
        if self.drop_prob > 0:
            c_mul = float(self.drop_prob) * float(self._beta_rng.beta(2.0, 5.0))
        if self.add_prob > 0:
            c_add = float(self.add_prob) * float(self._beta_rng.beta(2.0, 5.0))
        if c_mul == 0.0 and c_add == 0.0:
            return x
        if key is None:
            key = jax.random.PRNGKey(0)
        mul_noise, add_noise = _make_noise(
            key, x.shape, self.mul_impulse, self.add_impulse)
        return impulse_noise_inject_apply(x, mul_noise, add_noise, c_mul, c_add)


# ----------------------------------------------------------------------------
# Self-test
# ----------------------------------------------------------------------------
if __name__ == "__main__":
    root = jax.random.PRNGKey(0)
    kx, knoise, kx2, knoise2 = jax.random.split(root, 4)

    # Small shape consistent with the module (N, C, F, T).
    B, C, F, T = 2, 4, 16, 16
    x = jax.random.normal(kx, (B, C, F, T), dtype=jnp.float32)

    # 1) Direct kernel correctness vs a pure-JAX reference (same noise).
    c_mul, c_add = 0.07, 0.13
    mul_noise, add_noise = _make_noise(knoise, x.shape, 0.5, 0.5)
    got = impulse_noise_inject_apply(x, mul_noise, add_noise, c_mul, c_add)
    got = jax.block_until_ready(got)
    ref = (1.0 + c_mul * mul_noise) * x + c_add * add_noise
    assert got.shape == x.shape and got.dtype == x.dtype
    assert jnp.allclose(got, ref.astype(x.dtype), atol=1e-5, rtol=1e-5)

    # 2) A shape that exercises the grid with a partial edge block.
    x_big = jax.random.normal(kx2, (3, 5, 37, 200), dtype=jnp.float32)
    mul_b, add_b = _make_noise(knoise2, x_big.shape, 0.5, 0.5)
    got_b = jax.block_until_ready(
        impulse_noise_inject_apply(x_big, mul_b, add_b, c_mul, c_add))
    ref_b = (1.0 + c_mul * mul_b) * x_big + c_add * add_b
    assert jnp.allclose(got_b, ref_b.astype(x_big.dtype), atol=1e-5, rtol=1e-5)

    # 3) Module path: training applies noise, eval is identity.
    mod = ImpulseNoiseInject(drop_prob=[0.2, 0.4, 0.5, 0.5], seed=0)
    out = jax.block_until_ready(mod(x, key=knoise))
    assert out.shape == x.shape and out.dtype == x.dtype
    assert bool(jnp.all(jnp.isfinite(out)))

    mod.training = False
    out_eval = jax.block_until_ready(mod(x, key=knoise))
    assert jnp.array_equal(out_eval, x)

    print("KERNEL_OK")
</pallas_src>

<mosaic_0001>
module attributes {stable_mosaic.version = 11 : i64} {
  func.func @_impulse_noise_kernel(%arg0: i32, %arg1: i32, %arg2: memref<2xf32, #tpu.memory_space<smem>>, %arg3: memref<128x16xf32, #tpu.memory_space<vmem>>, %arg4: memref<128x16xf32, #tpu.memory_space<vmem>>, %arg5: memref<128x16xf32, #tpu.memory_space<vmem>>, %arg6: memref<128x16xf32, #tpu.memory_space<vmem>>) attributes {dimension_semantics = [#tpu.dimension_semantics<parallel>, #tpu.dimension_semantics<parallel>], iteration_bounds = array<i64: 1, 1>, scalar_prefetch = 0 : i64, scratch_operands = 0 : i64, tpu.core_type = #tpu.core_type<tc>, window_params = [{transform_indices = @transform_0, window_bounds = array<i64: 2>}, {transform_indices = @transform_1, window_bounds = array<i64: 128, 16>}, {transform_indices = @transform_2, window_bounds = array<i64: 128, 16>}, {transform_indices = @transform_3, window_bounds = array<i64: 128, 16>}, {transform_indices = @transform_4, window_bounds = array<i64: 128, 16>}]} {
    %c0 = arith.constant 0 : index
    %0 = memref.load %arg2[%c0] : memref<2xf32, #tpu.memory_space<smem>>
    %c1 = arith.constant 1 : index
    %1 = memref.load %arg2[%c1] : memref<2xf32, #tpu.memory_space<smem>>
    %c0_0 = arith.constant 0 : index
    %c0_1 = arith.constant 0 : index
    %2 = vector.load %arg3[%c0_0, %c0_1] : memref<128x16xf32, #tpu.memory_space<vmem>>, vector<128x16xf32>
    %c0_2 = arith.constant 0 : index
    %c0_3 = arith.constant 0 : index
    %3 = vector.load %arg4[%c0_2, %c0_3] : memref<128x16xf32, #tpu.memory_space<vmem>>, vector<128x16xf32>
    %4 = vector.broadcast %0 : f32 to vector<128x16xf32>
    %5 = arith.mulf %4, %3 : vector<128x16xf32>
    %cst = arith.constant 1.000000e+00 : f32
    %6 = vector.broadcast %cst : f32 to vector<128x16xf32>
    %7 = arith.addf %6, %5 : vector<128x16xf32>
    %8 = arith.mulf %7, %2 : vector<128x16xf32>
    %c0_4 = arith.constant 0 : index
    %c0_5 = arith.constant 0 : index
    %9 = vector.load %arg5[%c0_4, %c0_5] : memref<128x16xf32, #tpu.memory_space<vmem>>, vector<128x16xf32>
    %10 = vector.broadcast %1 : f32 to vector<128x16xf32>
    %11 = arith.mulf %10, %9 : vector<128x16xf32>
    %12 = arith.addf %8, %11 : vector<128x16xf32>
    %c0_6 = arith.constant 0 : index
    %c0_7 = arith.constant 0 : index
    %13 = vector.load %arg6[%c0_6, %c0_7] : memref<128x16xf32, #tpu.memory_space<vmem>>, vector<128x16xf32>
    tpu.vector_store %arg6[%c0_6, %c0_7], %12 {strides = array<i32>} : memref<128x16xf32, #tpu.memory_space<vmem>>, vector<128x16xf32>,
    return
  }
  func.func @transform_0(%arg0: i32, %arg1: i32) -> i32 {
    %c0_i32 = arith.constant 0 : i32
    %c0_i32_0 = arith.constant 0 : i32
    return %c0_i32 : i32
  }
  func.func @transform_1(%arg0: i32, %arg1: i32) -> (i32, i32) {
    %c0_i32 = arith.constant 0 : i32
    return %arg0, %arg1 : i32, i32
  }
  func.func @transform_2(%arg0: i32, %arg1: i32) -> (i32, i32) {
    %c0_i32 = arith.constant 0 : i32
    return %arg0, %arg1 : i32, i32
  }
  func.func @transform_3(%arg0: i32, %arg1: i32) -> (i32, i32) {
    %c0_i32 = arith.constant 0 : i32
    return %arg0, %arg1 : i32, i32
  }
  func.func @transform_4(%arg0: i32, %arg1: i32) -> (i32, i32) {
    %c0_i32 = arith.constant 0 : i32
    return %arg0, %arg1 : i32, i32
  }
}

</mosaic_0001>

<llo_original>
// kernel: tpu_custom_call.1
$region0: #{tpu_custom_call.1}
  #allocation0 [shape = 'u32[]', space=smem, size = 0x4, offset = 0x4, fixed_abs, tag = 'smem constant byte address 0x4 - core index']
  #allocation1 [shape = 'u32[144,128]{1,0:T(1,128)}', space=vmem, size = 0x12000, scoped, tag = 'internal scratch']
  %s0 = inlined_call_operand.vmem [shape: f32[2], index: 0, kind: input, shape index: {}]
  %s1 = inlined_call_operand.vmem [shape: f32[128,16], index: 1, kind: input, shape index: {}]
  %s2 = inlined_call_operand.vmem [shape: f32[128,16], index: 2, kind: input, shape index: {}]
  %s3 = inlined_call_operand.vmem [shape: f32[128,16], index: 3, kind: input, shape index: {}]
  %s4 = inlined_call_operand.vmem [shape: f32[128,16], index: 4, kind: output, shape index: {}]
  %s5 = sld [smem:[#allocation0]]
  $region30: #{tpu_custom_call.1} parent=0
    _
  %s7 = ssub.s32 1, %s5
  %s8 = scalar_select 0, %s7, %s5
  $region1: #{tpu_custom_call.1} parent=0
    #allocation2 [shape = 'u8[512]{0}', space=smem, size = 0x200, scoped, tag = 'input window, operand 0, single buffered']
    #allocation3 [shape = 's32[1]{0}', space=sflag, size = 0x4, scoped, tag = 'scoped memory for tpu_custom_call.1']
    %9 = vsyncpa [#allocation3], 0
    // Predicated region
    $region2: #{tpu_custom_call.1} parent=1 // pred_check
      _
    $region3: #{tpu_custom_call.1} parent=1 // pred_check_branch
      %11 = sbr.rel (0) target = $region5
    $region4: #{tpu_custom_call.1} parent=1 // pred_region
      %s13 = ssub.s32 16, 16
      %14 = vsyncadd [#allocation3], %s13
      %s16 = sshll.u32 %s0, 4
      %s17 = int_to_ptr.vmem [resolvable:$true] %s16
      %19 = dma.vmem_to_smem %s17, 16, [#allocation2], [#allocation3]
    $region5: #{tpu_custom_call.1} parent=1 // pred_fallthru
      _
    // Predicated region
    $region6: #{tpu_custom_call.1} parent=1 // pred_check
      _
    $region7: #{tpu_custom_call.1} parent=1 // pred_check_branch
      %21 = sbr.rel (0) target = $region9
    $region8: #{tpu_custom_call.1} parent=1 // pred_region
      _
    $region9: #{tpu_custom_call.1} parent=1 // pred_fallthru
      _
    // Predicated region
    $region10: #{tpu_custom_call.1} parent=1 // pred_check
      _
    $region11: #{tpu_custom_call.1} parent=1 // pred_check_branch
      %23 = sbr.rel (0) target = $region13
    $region12: #{tpu_custom_call.1} parent=1 // pred_region
      _
    $region13: #{tpu_custom_call.1} parent=1 // pred_fallthru
      _
    // Predicated region
    $region14: #{tpu_custom_call.1} parent=1 // pred_check
      _
    $region15: #{tpu_custom_call.1} parent=1 // pred_check_branch
      %25 = sbr.rel (0) target = $region17
    $region16: #{tpu_custom_call.1} parent=1 // pred_region
      _
    $region17: #{tpu_custom_call.1} parent=1 // pred_fallthru
      _
    // Predicated region
    $region18: #{tpu_custom_call.1} parent=1 // pred_check
      _
    $region19: #{tpu_custom_call.1} parent=1 // pred_check_branch
      %27 = sbr.rel (0) target = $region21
    $region20: #{tpu_custom_call.1} parent=1 // pred_region
      %28 = dma.done [#allocation3], 16
    $region21: #{tpu_custom_call.1} parent=1 // pred_fallthru
      _
    %29 = sfence
    %s30 = sld [smem:[#allocation2]]
    %s31 = sld [smem:[#allocation2 + $0x1]]
    %v32 = vld [vmem:[%s1] sm:$0xff]
    %v33 = vld [vmem:[%s1 + $0x8] sm:$0xff]
    %v34 = vld [vmem:[%s1 + $0x10] sm:$0xff]
    %v35 = vld [vmem:[%s1 + $0x18] sm:$0xff]
    %v36 = vld [vmem:[%s1 + $0x20] sm:$0xff]
    %v37 = vld [vmem:[%s1 + $0x28] sm:$0xff]
    %v38 = vld [vmem:[%s1 + $0x30] sm:$0xff]
    %v39 = vld [vmem:[%s1 + $0x38] sm:$0xff]
    %v40 = vld [vmem:[%s1 + $0x40] sm:$0xff]
    %v41 = vld [vmem:[%s1 + $0x48] sm:$0xff]
    %v42 = vld [vmem:[%s1 + $0x50] sm:$0xff]
    %v43 = vld [vmem:[%s1 + $0x58] sm:$0xff]
    %v44 = vld [vmem:[%s1 + $0x60] sm:$0xff]
    %v45 = vld [vmem:[%s1 + $0x68] sm:$0xff]
    %v46 = vld [vmem:[%s1 + $0x70] sm:$0xff]
    %v47 = vld [vmem:[%s1 + $0x78] sm:$0xff]
    %v48 = vld [vmem:[%s2] sm:$0xff]
    %v49 = vld [vmem:[%s2 + $0x8] sm:$0xff]
    %v50 = vld [vmem:[%s2 + $0x10] sm:$0xff]
    %v51 = vld [vmem:[%s2 + $0x18] sm:$0xff]
    %v52 = vld [vmem:[%s2 + $0x20] sm:$0xff]
    %v53 = vld [vmem:[%s2 + $0x28] sm:$0xff]
    %v54 = vld [vmem:[%s2 + $0x30] sm:$0xff]
    %v55 = vld [vmem:[%s2 + $0x38] sm:$0xff]
    %v56 = vld [vmem:[%s2 + $0x40] sm:$0xff]
    %v57 = vld [vmem:[%s2 + $0x48] sm:$0xff]
    %v58 = vld [vmem:[%s2 + $0x50] sm:$0xff]
    %v59 = vld [vmem:[%s2 + $0x58] sm:$0xff]
    %v60 = vld [vmem:[%s2 + $0x60] sm:$0xff]
    %v61 = vld [vmem:[%s2 + $0x68] sm:$0xff]
    %v62 = vld [vmem:[%s2 + $0x70] sm:$0xff]
    %v63 = vld [vmem:[%s2 + $0x78] sm:$0xff]
    %v64 = vstv %s30
    %v65 = vmul.f32 %v64, %v48
    %v66 = vmul.f32 %v64, %v49
    %v67 = vmul.f32 %v64, %v50
    %v68 = vmul.f32 %v64, %v51
    %v69 = vmul.f32 %v64, %v52
    %v70 = vmul.f32 %v64, %v53
    %v71 = vmul.f32 %v64, %v54
    %v72 = vmul.f32 %v64, %v55
    %v73 = vmul.f32 %v64, %v56
    %v74 = vmul.f32 %v64, %v57
    %v75 = vmul.f32 %v64, %v58
    %v76 = vmul.f32 %v64, %v59
    %v77 = vmul.f32 %v64, %v60
    %v78 = vmul.f32 %v64, %v61
    %v79 = vmul.f32 %v64, %v62
    %v80 = vmul.f32 %v64, %v63
    %v81 = vadd.f32 %v65, 1.0
    %v82 = vadd.f32 %v66, 1.0
    %v83 = vadd.f32 %v67, 1.0
    %v84 = vadd.f32 %v68, 1.0
    %v85 = vadd.f32 %v69, 1.0
    %v86 = vadd.f32 %v70, 1.0
    %v87 = vadd.f32 %v71, 1.0
    %v88 = vadd.f32 %v72, 1.0
    %v89 = vadd.f32 %v73, 1.0
    %v90 = vadd.f32 %v74, 1.0
    %v91 = vadd.f32 %v75, 1.0
    %v92 = vadd.f32 %v76, 1.0
    %v93 = vadd.f32 %v77, 1.0
    %v94 = vadd.f32 %v78, 1.0
    %v95 = vadd.f32 %v79, 1.0
    %v96 = vadd.f32 %v80, 1.0
    %v97 = vmul.f32 %v81, %v32
    %v98 = vmul.f32 %v82, %v33
    %v99 = vmul.f32 %v83, %v34
    %v100 = vmul.f32 %v84, %v35
    %v101 = vmul.f32 %v85, %v36
    %v102 = vmul.f32 %v86, %v37
    %v103 = vmul.f32 %v87, %v38
    %v104 = vmul.f32 %v88, %v39
    %v105 = vmul.f32 %v89, %v40
    %v106 = vmul.f32 %v90, %v41
    %v107 = vmul.f32 %v91, %v42
    %v108 = vmul.f32 %v92, %v43
    %v109 = vmul.f32 %v93, %v44
    %v110 = vmul.f32 %v94, %v45
    %v111 = vmul.f32 %v95, %v46
    %v112 = vmul.f32 %v96, %v47
    %v113 = vld [vmem:[%s3] sm:$0xff]
    %v114 = vld [vmem:[%s3 + $0x8] sm:$0xff]
    %v115 = vld [vmem:[%s3 + $0x10] sm:$0xff]
    %v116 = vld [vmem:[%s3 + $0x18] sm:$0xff]
    %v117 = vld [vmem:[%s3 + $0x20] sm:$0xff]
    %v118 = vld [vmem:[%s3 + $0x28] sm:$0xff]
    %v119 = vld [vmem:[%s3 + $0x30] sm:$0xff]
    %v120 = vld [vmem:[%s3 + $0x38] sm:$0xff]
    %v121 = vld [vmem:[%s3 + $0x40] sm:$0xff]
    %v122 = vld [vmem:[%s3 + $0x48] sm:$0xff]
    %v123 = vld [vmem:[%s3 + $0x50] sm:$0xff]
    %v124 = vld [vmem:[%s3 + $0x58] sm:$0xff]
    %v125 = vld [vmem:[%s3 + $0x60] sm:$0xff]
    %v126 = vld [vmem:[%s3 + $0x68] sm:$0xff]
    %v127 = vld [vmem:[%s3 + $0x70] sm:$0xff]
    %v128 = vld [vmem:[%s3 + $0x78] sm:$0xff]
    %v129 = vstv %s31
    %v130 = vmul.f32 %v129, %v113
    %v131 = vmul.f32 %v129, %v114
    %v132 = vmul.f32 %v129, %v115
    %v133 = vmul.f32 %v129, %v116
    %v134 = vmul.f32 %v129, %v117
    %v135 = vmul.f32 %v129, %v118
    %v136 = vmul.f32 %v129, %v119
    %v137 = vmul.f32 %v129, %v120
    %v138 = vmul.f32 %v129, %v121
    %v139 = vmul.f32 %v129, %v122
    %v140 = vmul.f32 %v129, %v123
    %v141 = vmul.f32 %v129, %v124
    %v142 = vmul.f32 %v129, %v125
    %v143 = vmul.f32 %v129, %v126
    %v144 = vmul.f32 %v129, %v127
    %v145 = vmul.f32 %v129, %v128
    %v146 = vadd.f32 %v97, %v130
    %v147 = vadd.f32 %v98, %v131
    %v148 = vadd.f32 %v99, %v132
    %v149 = vadd.f32 %v100, %v133
    %v150 = vadd.f32 %v101, %v134
    %v151 = vadd.f32 %v102, %v135
    %v152 = vadd.f32 %v103, %v136
    %v153 = vadd.f32 %v104, %v137
    %v154 = vadd.f32 %v105, %v138
    %v155 = vadd.f32 %v106, %v139
    %v156 = vadd.f32 %v107, %v140
    %v157 = vadd.f32 %v108, %v141
    %v158 = vadd.f32 %v109, %v142
    %v159 = vadd.f32 %v110, %v143
    %v160 = vadd.f32 %v111, %v144
    %v161 = vadd.f32 %v112, %v145
    %vm162 = vcmask 130048
    %163 = vst.msk [vmem:[%s4] sm:$0xff] %vm162, %v146
    %164 = vst.msk [vmem:[%s4 + $0x8] sm:$0xff] %vm162, %v147
    %165 = vst.msk [vmem:[%s4 + $0x10] sm:$0xff] %vm162, %v148
    %166 = vst.msk [vmem:[%s4 + $0x18] sm:$0xff] %vm162, %v149
    %167 = vst.msk [vmem:[%s4 + $0x20] sm:$0xff] %vm162, %v150
    %168 = vst.msk [vmem:[%s4 + $0x28] sm:$0xff] %vm162, %v151
    %169 = vst.msk [vmem:[%s4 + $0x30] sm:$0xff] %vm162, %v152
    %170 = vst.msk [vmem:[%s4 + $0x38] sm:$0xff] %vm162, %v153
    %171 = vst.msk [vmem:[%s4 + $0x40] sm:$0xff] %vm162, %v154
    %172 = vst.msk [vmem:[%s4 + $0x48] sm:$0xff] %vm162, %v155
    %173 = vst.msk [vmem:[%s4 + $0x50] sm:$0xff] %vm162, %v156
    %174 = vst.msk [vmem:[%s4 + $0x58] sm:$0xff] %vm162, %v157
    %175 = vst.msk [vmem:[%s4 + $0x60] sm:$0xff] %vm162, %v158
    %176 = vst.msk [vmem:[%s4 + $0x68] sm:$0xff] %vm162, %v159
    %177 = vst.msk [vmem:[%s4 + $0x70] sm:$0xff] %vm162, %v160
    %178 = vst.msk [vmem:[%s4 + $0x78] sm:$0xff] %vm162, %v161
    // Predicated region
    $region22: #{tpu_custom_call.1} parent=1 // pred_check
      _
    $region23: #{tpu_custom_call.1} parent=1 // pred_check_branch
      %180 = sbr.rel (0) target = $region25
    $region24: #{tpu_custom_call.1} parent=1 // pred_region
      _
    $region25: #{tpu_custom_call.1} parent=1 // pred_fallthru
      _
    // Predicated region
    $region26: #{tpu_custom_call.1} parent=1 // pred_check
      _
    $region27: #{tpu_custom_call.1} parent=1 // pred_check_branch
      %182 = sbr.rel (0) target = $region29
    $region28: #{tpu_custom_call.1} parent=1 // pred_region
      _
    $region29: #{tpu_custom_call.1} parent=1 // pred_fallthru
      _
    %183 = vsyncpa [#allocation3], 1

</llo_original>
